<compile_context>
chip_gen: v5e
topology: v5e:2x2
jax: 0.10.0
libtpu: 0.0.40
codegen_flags: <defaults>
</compile_context>

<pallas_src>
import functools

import jax
import jax.numpy as jnp
import numpy as np
from jax.experimental import pallas as pl
from jax.experimental.pallas import tpu as pltpu


def _round_up(x, m):
    return (x + m - 1) // m * m


# ----------------------------------------------------------------------------
# Kernel: one (tR, tS) tile of the folded (B*C, prod(spatial)) slab.
# ----------------------------------------------------------------------------
def _affine_kernel(x_ref, s_ref, b_ref, o_ref):
    # x_ref: (tR, tS)   s_ref/b_ref: (tR, 1) f32   o_ref: (tR, tS)
    x = x_ref[...].astype(jnp.float32)
    y = x * s_ref[...] + b_ref[...]          # VPU broadcast along lanes
    o_ref[...] = y.astype(o_ref.dtype)


# ----------------------------------------------------------------------------
# Wrapper
# ----------------------------------------------------------------------------
@jax.jit
def _affine_forward_2d(x, scale, bias):
    """x: (B, C, *spatial), scale/bias: (C,) -> same shape as x."""
    orig_shape = x.shape
    B, C = orig_shape[0], orig_shape[1]
    S = int(np.prod(orig_shape[2:])) if x.ndim > 2 else 1
    R = B * C

    # Fold batch+channel into rows, spatial into lanes (contiguous reshape).
    x2 = x.reshape(R, S)
    row_scale = jnp.tile(scale.astype(jnp.float32), B).reshape(R, 1)
    row_bias = jnp.tile(bias.astype(jnp.float32), B).reshape(R, 1)

    # Lane-dense tiling: last dim a big multiple of 128, rows a multiple of 8.
    tS = min(_round_up(S, 128), 2048)
    tR = min(_round_up(R, 8), 256)
    S_pad = _round_up(S, tS)
    R_pad = _round_up(R, tR)

    if (R_pad, S_pad) != (R, S):
        x2 = jnp.pad(x2, ((0, R_pad - R), (0, S_pad - S)))
        row_scale = jnp.pad(row_scale, ((0, R_pad - R), (0, 0)))
        row_bias = jnp.pad(row_bias, ((0, R_pad - R), (0, 0)))

    grid = (R_pad // tR, S_pad // tS)

    itemsize = x2.dtype.itemsize
    cost = pl.CostEstimate(
        flops=2 * R * S,                      # one mul + one add per element
        transcendentals=0,
        bytes_accessed=2 * R * S * itemsize + 2 * 4 * R * 2,
    )

    out = pl.pallas_call(
        _affine_kernel,
        out_shape=jax.ShapeDtypeStruct((R_pad, S_pad), x.dtype),
        grid_spec=pltpu.PrefetchScalarGridSpec(
            num_scalar_prefetch=0,
            grid=grid,
            in_specs=[
                pl.BlockSpec((tR, tS), lambda i, j: (i, j)),
                pl.BlockSpec((tR, 1), lambda i, j: (i, 0)),
                pl.BlockSpec((tR, 1), lambda i, j: (i, 0)),
            ],
            out_specs=pl.BlockSpec((tR, tS), lambda i, j: (i, j)),
        ),
        compiler_params=pltpu.CompilerParams(
            dimension_semantics=("parallel", "parallel"),
            vmem_limit_bytes=32 * 1024 * 1024,   # generous headroom; tiles ~<10 MiB
        ),
        cost_estimate=cost,
    )(x2, row_scale, row_bias)

    return out[:R, :S].reshape(orig_shape)


def affine_forward(x, scale=None, bias=None):
    """Matches Affine.forward: scale/bias are (num_parameters,) = (x.shape[1],).

    scale=None / bias=None behave as identity scale / zero bias (the standard
    scale=True, bias=True configuration is the one exercised below).
    """
    C = x.shape[1]
    if scale is None:
        scale = jnp.ones((C,), jnp.float32)
    if bias is None:
        bias = jnp.zeros((C,), jnp.float32)
    return _affine_forward_2d(x, scale, bias)


# ----------------------------------------------------------------------------
# Demo
# ----------------------------------------------------------------------------
if __name__ == "__main__":
    key = jax.random.PRNGKey(0)
    kx, ks, kb = jax.random.split(key, 3)

    B, C, H, W = 2, 4, 16, 16           # num_parameters = C = 4
    x = jax.random.normal(kx, (B, C, H, W), dtype=jnp.float32)
    # scale_init=1.0 plus a perturbation so the test is non-trivial.
    scale = 1.0 + 0.1 * jax.random.normal(ks, (C,), dtype=jnp.float32)
    bias = 0.1 * jax.random.normal(kb, (C,), dtype=jnp.float32)

    out = affine_forward(x, scale, bias)
    out = jax.block_until_ready(out)

    # Reference: same broadcasting as the PyTorch module
    # (scale/bias reshaped to (1, C, 1, 1)).
    ref = x * scale.reshape(1, C, 1, 1) + bias.reshape(1, C, 1, 1)
    np.testing.assert_allclose(np.asarray(out), np.asarray(ref),
                               rtol=1e-6, atol=1e-6)

    print("KERNEL_OK")
</pallas_src>

<mosaic_0001>
module attributes {stable_mosaic.version = 11 : i64} {
  func.func @_affine_kernel(%arg0: i32, %arg1: i32, %arg2: memref<8x256xf32, #tpu.memory_space<vmem>>, %arg3: memref<8x1xf32, #tpu.memory_space<vmem>>, %arg4: memref<8x1xf32, #tpu.memory_space<vmem>>, %arg5: memref<8x256xf32, #tpu.memory_space<vmem>>) attributes {dimension_semantics = [#tpu.dimension_semantics<parallel>, #tpu.dimension_semantics<parallel>], iteration_bounds = array<i64: 1, 1>, scalar_prefetch = 0 : i64, scratch_operands = 0 : i64, tpu.core_type = #tpu.core_type<tc>, window_params = [{transform_indices = @transform_0, window_bounds = array<i64: 8, 256>}, {transform_indices = @transform_1, window_bounds = array<i64: 8, 1>}, {transform_indices = @transform_2, window_bounds = array<i64: 8, 1>}, {transform_indices = @transform_3, window_bounds = array<i64: 8, 256>}]} {
    %c0 = arith.constant 0 : index
    %c0_0 = arith.constant 0 : index
    %0 = vector.load %arg2[%c0, %c0_0] : memref<8x256xf32, #tpu.memory_space<vmem>>, vector<8x256xf32>
    %c0_1 = arith.constant 0 : index
    %c0_2 = arith.constant 0 : index
    %1 = vector.load %arg3[%c0_1, %c0_2] : memref<8x1xf32, #tpu.memory_space<vmem>>, vector<8x1xf32>
    %2 = vector.broadcast %1 : vector<8x1xf32> to vector<8x256xf32>
    %3 = arith.mulf %0, %2 : vector<8x256xf32>
    %c0_3 = arith.constant 0 : index
    %c0_4 = arith.constant 0 : index
    %4 = vector.load %arg4[%c0_3, %c0_4] : memref<8x1xf32, #tpu.memory_space<vmem>>, vector<8x1xf32>
    %5 = vector.broadcast %4 : vector<8x1xf32> to vector<8x256xf32>
    %6 = arith.addf %3, %5 : vector<8x256xf32>
    %c0_5 = arith.constant 0 : index
    %c0_6 = arith.constant 0 : index
    %7 = vector.load %arg5[%c0_5, %c0_6] : memref<8x256xf32, #tpu.memory_space<vmem>>, vector<8x256xf32>
    tpu.vector_store %arg5[%c0_5, %c0_6], %6 {strides = array<i32>} : memref<8x256xf32, #tpu.memory_space<vmem>>, vector<8x256xf32>,
    return
  }
  func.func @transform_0(%arg0: i32, %arg1: i32) -> (i32, i32) {
    %c0_i32 = arith.constant 0 : i32
    return %arg0, %arg1 : i32, i32
  }
  func.func @transform_1(%arg0: i32, %arg1: i32) -> (i32, i32) {
    %c0_i32 = arith.constant 0 : i32
    %c0_i32_0 = arith.constant 0 : i32
    return %arg0, %c0_i32 : i32, i32
  }
  func.func @transform_2(%arg0: i32, %arg1: i32) -> (i32, i32) {
    %c0_i32 = arith.constant 0 : i32
    %c0_i32_0 = arith.constant 0 : i32
    return %arg0, %c0_i32 : i32, i32
  }
  func.func @transform_3(%arg0: i32, %arg1: i32) -> (i32, i32) {
    %c0_i32 = arith.constant 0 : i32
    return %arg0, %arg1 : i32, i32
  }
}

</mosaic_0001>

<llo_original>
// kernel: tile.18
$region0: #{tile.18}
  #allocation0 [shape = 's32[1]{0}', space=sflag, size = 0x4, scoped, tag = 'scoped memory for tile.18']
  %s0 = inlined_call_operand.vmem [shape: f32[4], index: 0, kind: input, shape index: {}]
  %s1 = inlined_call_operand.vmem [shape: f32[2,4], index: 1, kind: output, shape index: {}]
  // Predicated region
  $region2: #{tile.18} parent=0 // pred_check
    _
  $region3: #{tile.18} parent=0 // pred_check_branch
    %3 = sbr.rel (0) target = $region5
  $region4: #{tile.18} parent=0 // pred_region
    _
  $region5: #{tile.18} parent=0 // pred_fallthru
    _
  %v4 = vld [vmem:[%s0] ss:$0 sm:$0xff]
  %5 = vst [vmem:[%s1] sm:$0x3] %v4

// kernel: tile.13
$region0: #{tile.13}
  #allocation2 [shape = 's32[1]{0}', space=sflag, size = 0x4, scoped, tag = 'scoped memory for tile.13']
  %s0 = inlined_call_operand.hbm [shape: f32[4], index: 0, kind: input, shape index: {}]
  %s1 = inlined_call_operand.vmem [shape: f32[2,4], index: 1, kind: output, shape index: {}]
  $region1: #{tile.13} parent=0
    #allocation0 [shape = 'u8[512]{0}', space=vmem, size = 0x400, scoped, tag = 'operand span for operand 0']
    #allocation1 [shape = 's32[1]{0}', space=sflag, size = 0x4, scoped, tag = 'scoped memory for tile.13']
    %2 = vsyncpa [#allocation1], 0
    // Predicated region
    $region2: #{tile.13} parent=1 // pred_check
      _
    $region3: #{tile.13} parent=1 // pred_check_branch
      %4 = sbr.rel (0) target = $region5
    $region4: #{tile.13} parent=1 // pred_region
      %6 = vsyncadd [#allocation1], 0
      %s8 = sshll.u32 %s0, 4
      %s9 = int_to_ptr.hbm [resolvable:$true] %s8
      %s10 = sshll.u32 [#allocation0], 4
      %s11 = int_to_ptr.vmem [resolvable:$true] %s10
      %13 = dma.hbm_to_vmem [thread:$0]  %s9, 16, %s11, [#allocation1]
    $region5: #{tile.13} parent=1 // pred_fallthru
      _
    // Predicated region
    $region6: #{tile.13} parent=1 // pred_check
      _
    $region7: #{tile.13} parent=1 // pred_check_branch
      %15 = sbr.rel (0) target = $region9
    $region8: #{tile.13} parent=1 // pred_region
      %17 = dma.done [#allocation1], 16
    $region9: #{tile.13} parent=1 // pred_fallthru
      _
    %v18 = vld [vmem:[#allocation0] ss:$0 sm:$0xff]
    %19 = vst [vmem:[%s1] sm:$0x3] %v18
    %20 = vsyncpa [#allocation1], 1

// kernel: tile.1
$region0: #{tile.1}
  %s0 = inlined_call_operand.vmem [shape: f32[2,4], index: 0, kind: input, shape index: {}]
  %s1 = inlined_call_operand.vmem [shape: f32[8,1], index: 1, kind: output, shape index: {}]
  $region1: #{tile.1} parent=0
    #allocation0 [shape = 'u8[4096]{0}', space=vmem, size = 0x1000, scoped, tag = 'scoped mem for input reshape']
    %s3 = ssub.s32 4, 1
    %v4 = vld [vmem:[%s0] sm:%s3]
    %5 = vst [vmem:[#allocation0] sm:%s3] %v4
    %v6 = vld [vmem:[#allocation0] sm:$0x3]
    %vm7 = vcmask 7168
    %8 = vst.msk [vmem:[%s1] ss:$4 sm:$0x3] %vm7, %v6
    %v9 = vld [vmem:[#allocation0] sm:$0x3]
    %10 = vrot.lane.b32.xlu0 %v9, 127
    %v11 = vpop.permute.xlu0 %10
    %vm12 = vcmask 7168
    %s13 = scalar_lea.vmem %s1, 1
    %14 = vst.msk [vmem:[%s13] ss:$4 sm:$0x3] %vm12, %v11
    %v15 = vld [vmem:[#allocation0] sm:$0x3]
    %16 = vrot.lane.b32.xlu0 %v15, 126
    %v17 = vpop.permute.xlu0 %16
    %vm18 = vcmask 7168
    %s19 = scalar_lea.vmem %s1, 2
    %20 = vst.msk [vmem:[%s19] ss:$4 sm:$0x3] %vm18, %v17
    %v21 = vld [vmem:[#allocation0] sm:$0x3]
    %22 = vrot.lane.b32.xlu0 %v21, 125
    %v23 = vpop.permute.xlu0 %22
    %vm24 = vcmask 7168
    %s25 = scalar_lea.vmem %s1, 3
    %26 = vst.msk [vmem:[%s25] ss:$4 sm:$0x3] %vm24, %v23

// kernel: _affine_forward_2d.1
$region0: #{_affine_forward_2d.1}
  #allocation0 [shape = 'u32[]', space=smem, size = 0x4, offset = 0x4, fixed_abs, tag = 'smem constant byte address 0x4 - core index']
  #allocation1 [shape = 'u32[72,128]{1,0:T(1,128)}', space=vmem, size = 0x9000, scoped, tag = 'internal scratch']
  %s0 = inlined_call_operand.vmem [shape: f32[8,256], index: 0, kind: input, shape index: {}]
  %s1 = inlined_call_operand.vmem [shape: f32[8,1], index: 1, kind: input, shape index: {}]
  %s2 = inlined_call_operand.vmem [shape: f32[8,1], index: 2, kind: input, shape index: {}]
  %s3 = inlined_call_operand.vmem [shape: f32[8,256], index: 3, kind: output, shape index: {}]
  %s4 = sld [smem:[#allocation0]]
  $region22: #{_affine_forward_2d.1} parent=0
    _
  %s6 = ssub.s32 1, %s4
  %s7 = scalar_select 0, %s6, %s4
  // Predicated region
  $region2: #{_affine_forward_2d.1} parent=0 // pred_check
    _
  $region3: #{_affine_forward_2d.1} parent=0 // pred_check_branch
    %9 = sbr.rel (0) target = $region5
  $region4: #{_affine_forward_2d.1} parent=0 // pred_region
    _
  $region5: #{_affine_forward_2d.1} parent=0 // pred_fallthru
    _
  // Predicated region
  $region6: #{_affine_forward_2d.1} parent=0 // pred_check
    _
  $region7: #{_affine_forward_2d.1} parent=0 // pred_check_branch
    %11 = sbr.rel (0) target = $region9
  $region8: #{_affine_forward_2d.1} parent=0 // pred_region
    _
  $region9: #{_affine_forward_2d.1} parent=0 // pred_fallthru
    _
  // Predicated region
  $region10: #{_affine_forward_2d.1} parent=0 // pred_check
    _
  $region11: #{_affine_forward_2d.1} parent=0 // pred_check_branch
    %13 = sbr.rel (0) target = $region13
  $region12: #{_affine_forward_2d.1} parent=0 // pred_region
    _
  $region13: #{_affine_forward_2d.1} parent=0 // pred_fallthru
    _
  %v14 = vld [vmem:[%s0] sm:$0xff]
  %v15 = vld [vmem:[%s0 + $0x8] sm:$0xff]
  %v16 = vld [vmem:[%s1] sm:$0xff]
  %18 = vset.pattern.permute.xlu0 0
  %19 = vperm.xlu0 %18, %v16
  %v20 = vpop.permute.xlu0 %19
  %v22 = vmul.f32 %v14, %v20
  %v23 = vmul.f32 %v15, %v20
  %v24 = vld [vmem:[%s2] sm:$0xff]
  %26 = vset.pattern.permute.xlu0 0
  %27 = vperm.xlu0 %26, %v24
  %v28 = vpop.permute.xlu0 %27
  %v30 = vadd.f32 %v22, %v28
  %v31 = vadd.f32 %v23, %v28
  %32 = vst [vmem:[%s3] sm:$0xff] %v30
  %33 = vst [vmem:[%s3 + $0x8] sm:$0xff] %v31
  // Predicated region
  $region14: #{_affine_forward_2d.1} parent=0 // pred_check
    _
  $region15: #{_affine_forward_2d.1} parent=0 // pred_check_branch
    %35 = sbr.rel (0) target = $region17
  $region16: #{_affine_forward_2d.1} parent=0 // pred_region
    _
  $region17: #{_affine_forward_2d.1} parent=0 // pred_fallthru
    _
  // Predicated region
  $region18: #{_affine_forward_2d.1} parent=0 // pred_check
    _
  $region19: #{_affine_forward_2d.1} parent=0 // pred_check_branch
    %37 = sbr.rel (0) target = $region21
  $region20: #{_affine_forward_2d.1} parent=0 // pred_region
    _
  $region21: #{_affine_forward_2d.1} parent=0 // pred_fallthru
    _

</llo_original>
